<compile_context>
chip_gen: v7x
topology: tpu7x:2x2x1
jax: 0.10.0
libtpu: 0.0.40
codegen_flags: <defaults>
</compile_context>

<pallas_src>
import functools

import jax
import jax.numpy as jnp
from jax.experimental import pallas as pl
from jax.experimental.pallas import tpu as pltpu


def _layernorm_kernel(x_ref, w_ref, *rest, eps, inv_h, has_bias):
    # x_ref: (tile_rows, H) block in VMEM; w_ref (and b_ref): (1, H) f32, resident across grid.
    if has_bias:
        b_ref, o_ref = rest
    else:
        (o_ref,) = rest

    # Pass 1: mean.  Cast dies right after the reduce — no full f32 tile kept live.
    x0 = x_ref[...].astype(jnp.float32)
    mean = jnp.sum(x0, axis=-1, keepdims=True) * inv_h

    # Pass 2: centered variance (two-pass, matches F.layer_norm; no E[x^2]-E[x]^2 cancellation).
    # Re-read x_ref instead of holding the cast across the first reduction.
    d = x_ref[...].astype(jnp.float32) - mean
    var = jnp.sum(d * d, axis=-1, keepdims=True) * inv_h
    inv = jax.lax.rsqrt(var + eps)

    # Pass 3: normalize + affine.
    y = d * inv * w_ref[...]
    if has_bias:
        y = y + b_ref[...]
    o_ref[...] = y.astype(o_ref.dtype)


def _physical_vmem_bytes():
    """Physical VMEM (v5e/v6e: 128 MiB, v7x per-TC: 64 MiB); conservative fallback."""
    try:
        return int(pltpu.get_tpu_info().vmem_capacity_bytes)
    except Exception:
        return 64 * 1024 * 1024


def _per_row_vmem_bytes(hidden, itemsize):
    # Double-buffered input + double-buffered output (kernel dtype) per row, plus a margin
    # of ~2 f32 rows for compiler-internal scratch (tile-sized temps are re-read, not kept).
    return 4 * hidden * itemsize + 2 * hidden * 4


def _pick_tile_rows(num_rows, hidden, itemsize, vmem_limit):
    """Largest useful row tile: byte-based target, VMEM-budget bounded, sublane-aligned."""
    # sublane packing: 8 rows for 4-byte, 16 for 2-byte, 32 for 1-byte dtypes
    sub = max(8, 32 // max(1, itemsize))
    per_row = _per_row_vmem_bytes(hidden, itemsize)
    budget = int(vmem_limit * 0.6)
    vmem_cap_rows = max(sub, budget // max(1, per_row))
    # Byte-based target: ~4 MiB of input per tile (replaces the old fixed 1024-row cap,
    # which produced 128 KB-1 MB tiles for small/medium H and left bandwidth on the table).
    target_rows = max(sub, (4 * 1024 * 1024) // max(1, hidden * itemsize))
    tr = min(vmem_cap_rows, target_rows)
    tr = (tr // sub) * sub                                   # sublane-aligned
    tr = min(tr, ((num_rows + sub - 1) // sub) * sub)        # never exceed (rounded) row count
    return max(tr, sub)


def layer_norm_pallas(x, weight, bias=None, eps=1e-5, tile_rows=None):
    """LayerNorm over the last axis of x using a Pallas TPU kernel.

    x: (..., H); weight: (H,); bias: (H,) or None.  Equivalent to
    F.layer_norm(x, (H,), weight, bias, eps).
    """
    orig_shape = x.shape
    H = orig_shape[-1]
    x2 = x.reshape(-1, H)
    R = x2.shape[0]
    has_bias = bias is not None

    # Tiny params: pre-cast to f32 once in the wrapper so the kernel does no per-tile casts.
    w2 = weight.astype(jnp.float32).reshape(1, H)
    operands = [x2, w2]
    param_specs = [pl.BlockSpec((1, H), lambda i: (0, 0))]
    if has_bias:
        operands.append(bias.astype(jnp.float32).reshape(1, H))
        param_specs.append(pl.BlockSpec((1, H), lambda i: (0, 0)))

    itemsize = jnp.dtype(x.dtype).itemsize
    phys = _physical_vmem_bytes()
    vmem_limit = int(min(phys // 2, 64 * 1024 * 1024))
    if tile_rows is None:
        tile_rows = _pick_tile_rows(R, H, itemsize, vmem_limit)

    # Huge-H guard (matters on v7x's 64 MiB VMEM): even the sublane-floor tile plus resident
    # params may exceed the default scoped limit; raise the limit toward physical VMEM instead
    # of failing to compile.
    est = tile_rows * _per_row_vmem_bytes(H, itemsize) + 4 * H * 4 + (2 << 20)
    if est > vmem_limit:
        vmem_limit = int(min(phys * 7 // 8, est))
    # TODO(synk): if the sublane-floor tile still exceeds physical VMEM (H in the ~1M range),
    #             tile H with running mean / centered-variance accumulators (two-phase).

    grid = (pl.cdiv(R, tile_rows),)  # boundary block masked by Pallas; rows are independent

    kernel = functools.partial(
        _layernorm_kernel, eps=float(eps), inv_h=1.0 / float(H), has_bias=has_bias
    )

    out = pl.pallas_call(
        kernel,
        out_shape=jax.ShapeDtypeStruct((R, H), x.dtype),
        grid_spec=pltpu.PrefetchScalarGridSpec(
            num_scalar_prefetch=0,
            grid=grid,
            in_specs=[pl.BlockSpec((tile_rows, H), lambda i: (i, 0))] + param_specs,
            out_specs=pl.BlockSpec((tile_rows, H), lambda i: (i, 0)),
        ),
        compiler_params=pltpu.CompilerParams(
            dimension_semantics=("parallel",),
            vmem_limit_bytes=vmem_limit,
        ),
    )(*operands)

    return out.reshape(orig_shape)


def layer_norm_ref(x, weight, bias, eps=1e-5):
    xf = x.astype(jnp.float32)
    mean = jnp.mean(xf, axis=-1, keepdims=True)
    var = jnp.mean((xf - mean) ** 2, axis=-1, keepdims=True)
    y = (xf - mean) / jnp.sqrt(var + eps)
    if bias is None:
        return (y * weight).astype(x.dtype)
    return (y * weight + bias).astype(x.dtype)


if __name__ == "__main__":
    key = jax.random.PRNGKey(0)
    B, T, H = 2, 8, 32  # batch=2, seq=8, hidden=32 (ndim = H)

    x = jax.random.normal(key, (B, T, H), dtype=jnp.float32)
    weight = jnp.ones((H,), dtype=jnp.float32)   # per LayerNorm.__init__
    bias = jnp.zeros((H,), dtype=jnp.float32)

    out = layer_norm_pallas(x, weight, bias, eps=1e-5)
    out = jax.block_until_ready(out)
    ref = layer_norm_ref(x, weight, bias, eps=1e-5)
    assert out.shape == x.shape
    assert jnp.allclose(out, ref, atol=1e-5, rtol=1e-5), "mismatch vs reference"

    # Exercise the non-tile-aligned (masked boundary block) path: R = 3*5 = 15 rows.
    x2 = jax.random.normal(jax.random.PRNGKey(1), (3, 5, H), dtype=jnp.float32)
    w2 = jax.random.normal(jax.random.PRNGKey(2), (H,), dtype=jnp.float32)
    b2 = jax.random.normal(jax.random.PRNGKey(3), (H,), dtype=jnp.float32)
    out2 = jax.block_until_ready(layer_norm_pallas(x2, w2, b2, eps=1e-5))
    ref2 = layer_norm_ref(x2, w2, b2, eps=1e-5)
    assert jnp.allclose(out2, ref2, atol=1e-5, rtol=1e-5), "mismatch vs reference (ragged rows)"

    # Exercise the bias=None kernel variant (no b operand, no add).
    out3 = jax.block_until_ready(layer_norm_pallas(x2, w2, None, eps=1e-5))
    ref3 = layer_norm_ref(x2, w2, None, eps=1e-5)
    assert jnp.allclose(out3, ref3, atol=1e-5, rtol=1e-5), "mismatch vs reference (no bias)"

    print("KERNEL_OK")
</pallas_src>

<mosaic_0001>
module attributes {stable_mosaic.version = 11 : i64} {
  func.func @_layernorm_kernel(%arg0: i32, %arg1: memref<16x32xf32, #tpu.memory_space<vmem>>, %arg2: memref<1x32xf32, #tpu.memory_space<vmem>>, %arg3: memref<1x32xf32, #tpu.memory_space<vmem>>, %arg4: memref<16x32xf32, #tpu.memory_space<vmem>>) attributes {dimension_semantics = [#tpu.dimension_semantics<parallel>], iteration_bounds = array<i64: 1>, scalar_prefetch = 0 : i64, scratch_operands = 0 : i64, tpu.core_type = #tpu.core_type<tc>, window_params = [{transform_indices = @transform_0, window_bounds = array<i64: 16, 32>}, {pipeline_mode = #tpu.pipeline_mode<synchronous>, transform_indices = @transform_1, window_bounds = array<i64: 1, 32>}, {pipeline_mode = #tpu.pipeline_mode<synchronous>, transform_indices = @transform_2, window_bounds = array<i64: 1, 32>}, {transform_indices = @transform_3, window_bounds = array<i64: 16, 32>}]} {
    %c0 = arith.constant 0 : index
    %c0_0 = arith.constant 0 : index
    %0 = vector.load %arg1[%c0, %c0_0] : memref<16x32xf32, #tpu.memory_space<vmem>>, vector<16x32xf32>
    %cst = arith.constant dense<0.000000e+00> : vector<16xf32>
    %1 = vector.multi_reduction <add>, %0, %cst [1] : vector<16x32xf32> to vector<16xf32>
    %2 = vector.shape_cast %1 : vector<16xf32> to vector<16x1xf32>
    %cst_1 = arith.constant 3.125000e-02 : f32
    %3 = vector.broadcast %cst_1 : f32 to vector<16x1xf32>
    %4 = arith.mulf %2, %3 : vector<16x1xf32>
    %c0_2 = arith.constant 0 : index
    %c0_3 = arith.constant 0 : index
    %5 = vector.load %arg1[%c0_2, %c0_3] : memref<16x32xf32, #tpu.memory_space<vmem>>, vector<16x32xf32>
    %6 = vector.broadcast %4 : vector<16x1xf32> to vector<16x32xf32>
    %7 = arith.subf %5, %6 : vector<16x32xf32>
    %8 = arith.mulf %7, %7 : vector<16x32xf32>
    %cst_4 = arith.constant dense<0.000000e+00> : vector<16xf32>
    %9 = vector.multi_reduction <add>, %8, %cst_4 [1] : vector<16x32xf32> to vector<16xf32>
    %10 = vector.shape_cast %9 : vector<16xf32> to vector<16x1xf32>
    %cst_5 = arith.constant 3.125000e-02 : f32
    %11 = vector.broadcast %cst_5 : f32 to vector<16x1xf32>
    %12 = arith.mulf %10, %11 : vector<16x1xf32>
    %cst_6 = arith.constant 9.99999974E-6 : f32
    %13 = vector.broadcast %cst_6 : f32 to vector<16x1xf32>
    %14 = arith.addf %12, %13 : vector<16x1xf32>
    %15 = math.rsqrt %14 : vector<16x1xf32>
    %16 = vector.broadcast %15 : vector<16x1xf32> to vector<16x32xf32>
    %17 = arith.mulf %7, %16 : vector<16x32xf32>
    %c0_7 = arith.constant 0 : index
    %c0_8 = arith.constant 0 : index
    %18 = vector.load %arg2[%c0_7, %c0_8] : memref<1x32xf32, #tpu.memory_space<vmem>>, vector<1x32xf32>
    %19 = vector.broadcast %18 : vector<1x32xf32> to vector<16x32xf32>
    %20 = arith.mulf %17, %19 : vector<16x32xf32>
    %c0_9 = arith.constant 0 : index
    %c0_10 = arith.constant 0 : index
    %21 = vector.load %arg3[%c0_9, %c0_10] : memref<1x32xf32, #tpu.memory_space<vmem>>, vector<1x32xf32>
    %22 = vector.broadcast %21 : vector<1x32xf32> to vector<16x32xf32>
    %23 = arith.addf %20, %22 : vector<16x32xf32>
    %c0_11 = arith.constant 0 : index
    %c0_12 = arith.constant 0 : index
    %24 = vector.load %arg4[%c0_11, %c0_12] : memref<16x32xf32, #tpu.memory_space<vmem>>, vector<16x32xf32>
    tpu.vector_store %arg4[%c0_11, %c0_12], %23 {strides = array<i32>} : memref<16x32xf32, #tpu.memory_space<vmem>>, vector<16x32xf32>,
    return
  }
  func.func @transform_0(%arg0: i32) -> (i32, i32) {
    %c0_i32 = arith.constant 0 : i32
    %c0_i32_0 = arith.constant 0 : i32
    return %arg0, %c0_i32 : i32, i32
  }
  func.func @transform_1(%arg0: i32) -> (i32, i32) {
    %c0_i32 = arith.constant 0 : i32
    %c0_i32_0 = arith.constant 0 : i32
    %c0_i32_1 = arith.constant 0 : i32
    return %c0_i32, %c0_i32_0 : i32, i32
  }
  func.func @transform_2(%arg0: i32) -> (i32, i32) {
    %c0_i32 = arith.constant 0 : i32
    %c0_i32_0 = arith.constant 0 : i32
    %c0_i32_1 = arith.constant 0 : i32
    return %c0_i32, %c0_i32_0 : i32, i32
  }
  func.func @transform_3(%arg0: i32) -> (i32, i32) {
    %c0_i32 = arith.constant 0 : i32
    %c0_i32_0 = arith.constant 0 : i32
    return %arg0, %c0_i32 : i32, i32
  }
}

</mosaic_0001>

<llo_original>
// kernel: tpu_custom_call.1
$region0: #{tpu_custom_call.1}
  #allocation0 [shape = 'u32[]', space=smem, size = 0x4, offset = 0x4, fixed_abs, tag = 'smem constant byte address 0x4 - core index']
  #allocation1 [shape = 'u32[144,128]{1,0:T(1,128)}', space=vmem, size = 0x12000, scoped, tag = 'internal scratch']
  %s0 = inlined_call_operand.hbm [shape: f32[16,32], index: 0, kind: input, shape index: {}]
  %s1 = inlined_call_operand.vmem [shape: f32[1,32], index: 1, kind: input, shape index: {}]
  %s2 = inlined_call_operand.vmem [shape: f32[1,32], index: 2, kind: input, shape index: {}]
  %s3 = inlined_call_operand.hbm [shape: f32[16,32], index: 3, kind: output, shape index: {}]
  %s4 = sld [smem:[#allocation0]]
  $region26: #{tpu_custom_call.1} parent=0
    _
  %s6 = ssub.s32 1, %s4
  %s7 = scalar_select 0, %s6, %s4
  $region1: #{tpu_custom_call.1} parent=0
    #allocation2 [shape = 'u8[8192]{0}', space=vmem, size = 0x2000, scoped, tag = 'input window, operand 0, single buffered']
    #allocation3 [shape = 's32[1]{0}', space=sflag, size = 0x4, scoped, tag = 'scoped memory for tpu_custom_call.1']
    #allocation4 [shape = 's32[1]{0}', space=sflag, size = 0x4, scoped, tag = 'scoped memory for tpu_custom_call.1']
    #allocation5 [shape = 'u8[8192]{0}', space=vmem, size = 0x2000, scoped, tag = 'output window, operand 0, single buffered']
    %8 = vsyncpa [#allocation3], 0
    %9 = vsyncpa [#allocation4], 0
    // Predicated region
    $region2: #{tpu_custom_call.1} parent=1 // pred_check
      _
    $region3: #{tpu_custom_call.1} parent=1 // pred_check_branch
      %11 = sbr.rel (0) target = $region5
    $region4: #{tpu_custom_call.1} parent=1 // pred_region
      %s13 = ssub.s32 256, 256
      %14 = vsyncadd [#allocation3], %s13
      %s15 = sshll.u32 [#allocation2], 4
      %s16 = int_to_ptr.vmem [resolvable:$true] %s15
      %21 = dma.hbm_to_vmem [thread:$0]  %s0, 256, %s16, [#allocation3], 128, 128, 8
    $region5: #{tpu_custom_call.1} parent=1 // pred_fallthru
      _
    // Predicated region
    $region6: #{tpu_custom_call.1} parent=1 // pred_check
      _
    $region7: #{tpu_custom_call.1} parent=1 // pred_check_branch
      %23 = sbr.rel (0) target = $region9
    $region8: #{tpu_custom_call.1} parent=1 // pred_region
      _
    $region9: #{tpu_custom_call.1} parent=1 // pred_fallthru
      _
    // Predicated region
    $region10: #{tpu_custom_call.1} parent=1 // pred_check
      _
    $region11: #{tpu_custom_call.1} parent=1 // pred_check_branch
      %25 = sbr.rel (0) target = $region13
    $region12: #{tpu_custom_call.1} parent=1 // pred_region
      _
    $region13: #{tpu_custom_call.1} parent=1 // pred_fallthru
      _
    // Predicated region
    $region14: #{tpu_custom_call.1} parent=1 // pred_check
      _
    $region15: #{tpu_custom_call.1} parent=1 // pred_check_branch
      %27 = sbr.rel (0) target = $region17
    $region16: #{tpu_custom_call.1} parent=1 // pred_region
      %28 = dma.done [#allocation3], 256
    $region17: #{tpu_custom_call.1} parent=1 // pred_fallthru
      _
    %v29 = vld [vmem:[#allocation2] sm:$0xff]
    %v30 = vld [vmem:[#allocation2 + $0x8] sm:$0xff]
    %vm31 = vcmask 261120
    %v32 = vsel %vm31, %v29, 0.0
    %33 = vadd.xlane.f32.xlu0 %v32
    %v34 = vpop.xlane.xlu0 %33
    %v35 = vsel %vm31, %v30, 0.0
    %36 = vadd.xlane.f32.xlu0 %v35
    %v37 = vpop.xlane.xlu0 %36
    %v38 = vmul.f32 %v34, 0.03125
    %v39 = vmul.f32 %v37, 0.03125
    %v40 = vsub.f32 %v29, %v38
    %v41 = vsub.f32 %v30, %v39
    %v42 = vmul.f32 %v40, %v40
    %v43 = vmul.f32 %v41, %v41
    %v44 = vsel %vm31, %v42, 0.0
    %45 = vadd.xlane.f32.xlu0 %v44
    %v46 = vpop.xlane.xlu0 %45
    %v47 = vsel %vm31, %v43, 0.0
    %48 = vadd.xlane.f32.xlu0 %v47
    %v49 = vpop.xlane.xlu0 %48
    %v50 = vmul.f32 %v46, 0.03125
    %v51 = vmul.f32 %v49, 0.03125
    %v52 = vadd.f32 %v50, 1e-05
    %v53 = vadd.f32 %v51, 1e-05
    %v54 = vrsqrt.pop %v52
    %v55 = vrsqrt.pop %v53
    %v56 = vmul.f32 %v40, %v54
    %v57 = vmul.f32 %v41, %v55
    %v58 = vld [vmem:[%s1] sm:$0x1]
    %v60 = vlaneseq
    %v61 = vshrl.u32 %v60, 7
    %v62 = vsub.s32 0, %v61
    %v63 = vrot.slane %v58, %v62
    %v65 = vmul.f32 %v56, %v63
    %v66 = vmul.f32 %v57, %v63
    %v67 = vld [vmem:[%s2] sm:$0x1]
    %v69 = vlaneseq
    %v70 = vshrl.u32 %v69, 7
    %v71 = vsub.s32 0, %v70
    %v72 = vrot.slane %v67, %v71
    %v74 = vadd.f32 %v65, %v72
    %v75 = vadd.f32 %v66, %v72
    %76 = vst.msk [vmem:[#allocation5] sm:$0xff] %vm31, %v74
    %77 = vst.msk [vmem:[#allocation5 + $0x8] sm:$0xff] %vm31, %v75
    // Predicated region
    $region18: #{tpu_custom_call.1} parent=1 // pred_check
      _
    $region19: #{tpu_custom_call.1} parent=1 // pred_check_branch
      %79 = sbr.rel (0) target = $region21
    $region20: #{tpu_custom_call.1} parent=1 // pred_region
      %s81 = ssub.s32 256, 256
      %82 = vsyncadd [#allocation4], %s81
      %s83 = sshll.u32 [#allocation5], 4
      %s84 = int_to_ptr.vmem [resolvable:$true] %s83
      %89 = dma.vmem_to_hbm [thread:$0]  %s84, 256, %s3, [#allocation4], 128, 128, 8
    $region21: #{tpu_custom_call.1} parent=1 // pred_fallthru
      _
    // Predicated region
    $region22: #{tpu_custom_call.1} parent=1 // pred_check
      _
    $region23: #{tpu_custom_call.1} parent=1 // pred_check_branch
      %91 = sbr.rel (0) target = $region25
    $region24: #{tpu_custom_call.1} parent=1 // pred_region
      %92 = dma.done [#allocation4], 256
    $region25: #{tpu_custom_call.1} parent=1 // pred_fallthru
      _
    %93 = vsyncpa [#allocation3], 1
    %94 = vsyncpa [#allocation4], 1

</llo_original>
